<compile_context>
chip_gen: v5e
topology: v5e:2x2
jax: 0.10.0
libtpu: 0.0.40
codegen_flags: <defaults>
</compile_context>

<pallas_src>
import functools

import jax
import jax.numpy as jnp
from jax.experimental import pallas as pl
from jax.experimental.pallas import tpu as pltpu


def _set2set_kernel(x_ref, m_ref, wx0_ref, wrest_ref, b_ref, out_ref,
                    *, n_iters, n_layers, hidden):
    H = hidden
    x = x_ref[...]                                   # (N, H)
    m = m_ref[...]                                   # (B_pad, N) one-hot membership
    Bp = m.shape[0]

    # scatter(x, batch, 'sum')  ==  M @ x   (iteration-invariant)
    x_sum = jnp.dot(m, x, preferred_element_type=jnp.float32)        # (Bp, H)
    # scatter(q_star[batch], batch, 'sum')  ==  counts * q_star
    counts = jnp.sum(m, axis=1, keepdims=True)                       # (Bp, 1)

    # Hoisted, iteration-invariant layer-0 contribution (x_sum projection + bias).
    gates_base0 = (jnp.dot(x_sum, wx0_ref[...],
                           preferred_element_type=jnp.float32)
                   + b_ref[0])                                       # (Bp, 4H)

    h = [jnp.zeros((Bp, H), jnp.float32) for _ in range(n_layers)]
    c = [jnp.zeros((Bp, H), jnp.float32) for _ in range(n_layers)]
    q_star = jnp.zeros((Bp, H), jnp.float32)

    for _ in range(n_iters):
        q_pooled = counts * q_star                                   # (Bp, H)
        for l in range(n_layers):
            if l == 0:
                inp = jnp.concatenate([q_pooled, h[0]], axis=-1)     # (Bp, 2H)
                gates = gates_base0 + jnp.dot(
                    inp, wrest_ref[0], preferred_element_type=jnp.float32)
            else:
                inp = jnp.concatenate([h[l - 1], h[l]], axis=-1)     # (Bp, 2H)
                gates = jnp.dot(
                    inp, wrest_ref[l],
                    preferred_element_type=jnp.float32) + b_ref[l]
            # torch gate order along the 4H lane axis: i | f | g | o
            i_g = jax.nn.sigmoid(gates[:, 0 * H:1 * H])
            f_g = jax.nn.sigmoid(gates[:, 1 * H:2 * H])
            g_g = jnp.tanh(gates[:, 2 * H:3 * H])
            o_g = jax.nn.sigmoid(gates[:, 3 * H:4 * H])
            c[l] = f_g * c[l] + i_g * g_g
            h[l] = o_g * jnp.tanh(c[l])
        q_star = h[n_layers - 1]

    # output = cat([q_star, h_n[-1]], -1); the two halves are identical by
    # construction in the matgl module (q_star IS the top-layer hidden state).
    out_ref[:, :H] = q_star
    out_ref[:, H:] = q_star


def prepare_set2set_params(params, in_feats):
    """Repack torch-layout LSTM weights (pure transpose/concat, no scatters).

    Returns:
      wx0  : (H, 4H)            — layer-0 weight acting on the x_sum half
      wrest: (n_layers, 2H, 4H) — [W_q | W_hh] for layer 0, [W_ih | W_hh] else
      bias : (n_layers, 1, 4H)  — b_ih + b_hh per layer
    Gate blocks along the 4H axis follow torch order i|f|g|o.
    """
    H = in_feats
    wx0 = None
    wrest, bias = [], []
    for l, (W_ih, W_hh, b_ih, b_hh) in enumerate(params):
        wt = W_ih.T                                   # (in_dim, 4H)
        if l == 0:
            wx0 = wt[:H]                              # acts on x_sum (hoisted)
            wrest.append(jnp.concatenate([wt[H:], W_hh.T], axis=0))   # (2H, 4H)
        else:
            wrest.append(jnp.concatenate([wt, W_hh.T], axis=0))       # (2H, 4H)
        bias.append((b_ih + b_hh)[None, :])                           # (1, 4H)
    return wx0, jnp.stack(wrest), jnp.stack(bias)


@functools.partial(jax.jit, static_argnames=("n_iters", "n_layers", "num_graphs"))
def set2set_pallas(x, batch, wx0, wrest, bias, *, n_iters, n_layers, num_graphs):
    """x: (N, H) f32, batch: (N,) int32, prepacked weights from prepare_set2set_params."""
    N, H = x.shape
    # Pad the graph/batch dim to a sublane multiple so the gate slab is full vregs.
    b_pad = max(8, ((num_graphs + 7) // 8) * 8)
    m = (batch[None, :] == jnp.arange(b_pad, dtype=batch.dtype)[:, None]
         ).astype(jnp.float32)                                        # (b_pad, N)

    kernel = functools.partial(_set2set_kernel, n_iters=n_iters,
                               n_layers=n_layers, hidden=H)
    out = pl.pallas_call(
        kernel,
        out_shape=jax.ShapeDtypeStruct((b_pad, 2 * H), jnp.float32),
        in_specs=[pl.BlockSpec(memory_space=pltpu.MemorySpace.VMEM)] * 5,
        out_specs=pl.BlockSpec(memory_space=pltpu.MemorySpace.VMEM),
    )(x, m, wx0, wrest, bias)
    return out[:num_graphs]


def ref_set2set(x, batch, params, *, n_iters, n_layers, num_graphs):
    """Pure-JAX reference mirroring the PyTorch forward exactly."""
    H = x.shape[1]
    h = jnp.zeros((n_layers, num_graphs, H), jnp.float32)
    c = jnp.zeros((n_layers, num_graphs, H), jnp.float32)
    q_star = jnp.zeros((num_graphs, H), jnp.float32)
    for _ in range(n_iters):
        q_exp = q_star[batch]
        lstm_in = jnp.concatenate([x, q_exp], axis=-1)
        pooled = jax.ops.segment_sum(lstm_in, batch, num_segments=num_graphs)
        inp = pooled
        new_h, new_c = [], []
        for l in range(n_layers):
            W_ih, W_hh, b_ih, b_hh = params[l]
            gates = inp @ W_ih.T + h[l] @ W_hh.T + b_ih + b_hh
            i_g, f_g, g_g, o_g = jnp.split(gates, 4, axis=-1)
            cl = jax.nn.sigmoid(f_g) * c[l] + jax.nn.sigmoid(i_g) * jnp.tanh(g_g)
            hl = jax.nn.sigmoid(o_g) * jnp.tanh(cl)
            inp = hl
            new_h.append(hl)
            new_c.append(cl)
        h = jnp.stack(new_h)
        c = jnp.stack(new_c)
        q_star = h[-1]
    return jnp.concatenate([q_star, h[-1]], axis=-1)


if __name__ == "__main__":
    in_feats = 32
    n_iters = 3
    n_layers = 2
    num_graphs = 4
    batch = jnp.array([0] * 8 + [1] * 10 + [2] * 6 + [3] * 8, dtype=jnp.int32)
    num_nodes = batch.shape[0]

    key = jax.random.PRNGKey(0)
    keys = jax.random.split(key, 1 + 4 * n_layers)
    x = jax.random.normal(keys[0], (num_nodes, in_feats), dtype=jnp.float32)

    # Deterministic nn.LSTM-style init: U(-1/sqrt(H), 1/sqrt(H))
    k = 1.0 / (in_feats ** 0.5)
    params = []
    ki = 1
    for l in range(n_layers):
        in_dim = 2 * in_feats if l == 0 else in_feats
        W_ih = jax.random.uniform(keys[ki], (4 * in_feats, in_dim),
                                  minval=-k, maxval=k, dtype=jnp.float32); ki += 1
        W_hh = jax.random.uniform(keys[ki], (4 * in_feats, in_feats),
                                  minval=-k, maxval=k, dtype=jnp.float32); ki += 1
        b_ih = jax.random.uniform(keys[ki], (4 * in_feats,),
                                  minval=-k, maxval=k, dtype=jnp.float32); ki += 1
        b_hh = jax.random.uniform(keys[ki], (4 * in_feats,),
                                  minval=-k, maxval=k, dtype=jnp.float32); ki += 1
        params.append((W_ih, W_hh, b_ih, b_hh))

    # Weight repack done once (outside the per-call path).
    wx0, wrest, bias = prepare_set2set_params(params, in_feats)

    out = set2set_pallas(x, batch, wx0, wrest, bias, n_iters=n_iters,
                         n_layers=n_layers, num_graphs=num_graphs)
    out = jax.block_until_ready(out)

    ref = ref_set2set(x, batch, params, n_iters=n_iters,
                      n_layers=n_layers, num_graphs=num_graphs)
    assert out.shape == (num_graphs, 2 * in_feats)
    assert jnp.allclose(out, ref, rtol=1e-4, atol=1e-4), "mismatch vs reference"
    print("KERNEL_OK")
</pallas_src>

<mosaic_0001>
module attributes {stable_mosaic.version = 11 : i64} {
  func.func @_set2set_kernel(%arg0: memref<32x32xf32, #tpu.memory_space<vmem>>, %arg1: memref<8x32xf32, #tpu.memory_space<vmem>>, %arg2: memref<32x128xf32, #tpu.memory_space<vmem>>, %arg3: memref<2x64x128xf32, #tpu.memory_space<vmem>>, %arg4: memref<2x1x128xf32, #tpu.memory_space<vmem>>, %arg5: memref<8x64xf32, #tpu.memory_space<vmem>>) attributes {dimension_semantics = [], scalar_prefetch = 0 : i64, scratch_operands = 0 : i64, tpu.core_type = #tpu.core_type<tc>} {
    %c0 = arith.constant 0 : index
    %c0_0 = arith.constant 0 : index
    %0 = vector.load %arg0[%c0, %c0_0] : memref<32x32xf32, #tpu.memory_space<vmem>>, vector<32x32xf32>
    %c0_1 = arith.constant 0 : index
    %c0_2 = arith.constant 0 : index
    %1 = vector.load %arg1[%c0_1, %c0_2] : memref<8x32xf32, #tpu.memory_space<vmem>>, vector<8x32xf32>
    %cst = arith.constant dense<0.000000e+00> : vector<8x32xf32>
    %2 = tpu.matmul %1, %0, %cst {dimension_numbers = #tpu.dot_dimension_numbers<[1], [0], [0], [1], [0, 0, 1, 1], [], []>} : vector<8x32xf32>, vector<32x32xf32>, vector<8x32xf32> -> vector<8x32xf32>
    %cst_3 = arith.constant dense<0.000000e+00> : vector<8xf32>
    %3 = vector.multi_reduction <add>, %1, %cst_3 [1] : vector<8x32xf32> to vector<8xf32>
    %4 = vector.shape_cast %3 : vector<8xf32> to vector<8x1xf32>
    %c0_4 = arith.constant 0 : index
    %c0_5 = arith.constant 0 : index
    %5 = vector.load %arg2[%c0_4, %c0_5] : memref<32x128xf32, #tpu.memory_space<vmem>>, vector<32x128xf32>
    %cst_6 = arith.constant dense<0.000000e+00> : vector<8x128xf32>
    %6 = tpu.matmul %2, %5, %cst_6 {dimension_numbers = #tpu.dot_dimension_numbers<[1], [0], [0], [1], [0, 0, 1, 1], [], []>} : vector<8x32xf32>, vector<32x128xf32>, vector<8x128xf32> -> vector<8x128xf32>
    %c0_7 = arith.constant 0 : index
    %c0_8 = arith.constant 0 : index
    %c0_9 = arith.constant 0 : index
    %7 = vector.load %arg4[%c0_7, %c0_8, %c0_9] : memref<2x1x128xf32, #tpu.memory_space<vmem>>, vector<1x1x128xf32>
    %8 = vector.shape_cast %7 : vector<1x1x128xf32> to vector<1x128xf32>
    %9 = vector.broadcast %8 : vector<1x128xf32> to vector<8x128xf32>
    %10 = arith.addf %6, %9 : vector<8x128xf32>
    %cst_10 = arith.constant 0.000000e+00 : f32
    %11 = vector.broadcast %cst_10 : f32 to vector<8x32xf32>
    %cst_11 = arith.constant 0.000000e+00 : f32
    %12 = vector.broadcast %cst_11 : f32 to vector<8x32xf32>
    %cst_12 = arith.constant 0.000000e+00 : f32
    %13 = vector.broadcast %cst_12 : f32 to vector<8x32xf32>
    %cst_13 = arith.constant 0.000000e+00 : f32
    %14 = vector.broadcast %cst_13 : f32 to vector<8x32xf32>
    %cst_14 = arith.constant 0.000000e+00 : f32
    %15 = vector.broadcast %cst_14 : f32 to vector<8x32xf32>
    %16 = vector.broadcast %4 : vector<8x1xf32> to vector<8x32xf32>
    %17 = arith.mulf %16, %15 : vector<8x32xf32>
    %18 = tpu.concatenate %17, %11 in 1 : vector<8x32xf32>, vector<8x32xf32> -> vector<8x64xf32>
    %c0_15 = arith.constant 0 : index
    %c0_16 = arith.constant 0 : index
    %c0_17 = arith.constant 0 : index
    %19 = vector.load %arg3[%c0_15, %c0_16, %c0_17] : memref<2x64x128xf32, #tpu.memory_space<vmem>>, vector<1x64x128xf32>
    %20 = vector.shape_cast %19 : vector<1x64x128xf32> to vector<64x128xf32>
    %cst_18 = arith.constant dense<0.000000e+00> : vector<8x128xf32>
    %21 = tpu.matmul %18, %20, %cst_18 {dimension_numbers = #tpu.dot_dimension_numbers<[1], [0], [0], [1], [0, 0, 1, 1], [], []>} : vector<8x64xf32>, vector<64x128xf32>, vector<8x128xf32> -> vector<8x128xf32>
    %22 = arith.addf %10, %21 : vector<8x128xf32>
    %23 = vector.extract_strided_slice %22 {offsets = [0, 0], sizes = [8, 32], strides = [1, 1]} : vector<8x128xf32> to vector<8x32xf32>
    %24 = arith.negf %23 : vector<8x32xf32>
    %25 = math.exp %24 : vector<8x32xf32>
    %cst_19 = arith.constant 1.000000e+00 : f32
    %26 = vector.broadcast %cst_19 : f32 to vector<8x32xf32>
    %27 = arith.addf %26, %25 : vector<8x32xf32>
    %28 = arith.divf %26, %27 : vector<8x32xf32>
    %29 = vector.extract_strided_slice %22 {offsets = [0, 32], sizes = [8, 32], strides = [1, 1]} : vector<8x128xf32> to vector<8x32xf32>
    %30 = arith.negf %29 : vector<8x32xf32>
    %31 = math.exp %30 : vector<8x32xf32>
    %cst_20 = arith.constant 1.000000e+00 : f32
    %32 = vector.broadcast %cst_20 : f32 to vector<8x32xf32>
    %33 = arith.addf %32, %31 : vector<8x32xf32>
    %34 = arith.divf %32, %33 : vector<8x32xf32>
    %35 = vector.extract_strided_slice %22 {offsets = [0, 64], sizes = [8, 32], strides = [1, 1]} : vector<8x128xf32> to vector<8x32xf32>
    %36 = math.tanh %35 : vector<8x32xf32>
    %37 = vector.extract_strided_slice %22 {offsets = [0, 96], sizes = [8, 32], strides = [1, 1]} : vector<8x128xf32> to vector<8x32xf32>
    %38 = arith.negf %37 : vector<8x32xf32>
    %39 = math.exp %38 : vector<8x32xf32>
    %cst_21 = arith.constant 1.000000e+00 : f32
    %40 = vector.broadcast %cst_21 : f32 to vector<8x32xf32>
    %41 = arith.addf %40, %39 : vector<8x32xf32>
    %42 = arith.divf %40, %41 : vector<8x32xf32>
    %43 = arith.mulf %34, %13 : vector<8x32xf32>
    %44 = arith.mulf %28, %36 : vector<8x32xf32>
    %45 = arith.addf %43, %44 : vector<8x32xf32>
    %46 = math.tanh %45 : vector<8x32xf32>
    %47 = arith.mulf %42, %46 : vector<8x32xf32>
    %48 = tpu.concatenate %47, %12 in 1 : vector<8x32xf32>, vector<8x32xf32> -> vector<8x64xf32>
    %c1 = arith.constant 1 : index
    %c0_22 = arith.constant 0 : index
    %c0_23 = arith.constant 0 : index
    %49 = vector.load %arg3[%c1, %c0_22, %c0_23] : memref<2x64x128xf32, #tpu.memory_space<vmem>>, vector<1x64x128xf32>
    %50 = vector.shape_cast %49 : vector<1x64x128xf32> to vector<64x128xf32>
    %cst_24 = arith.constant dense<0.000000e+00> : vector<8x128xf32>
    %51 = tpu.matmul %48, %50, %cst_24 {dimension_numbers = #tpu.dot_dimension_numbers<[1], [0], [0], [1], [0, 0, 1, 1], [], []>} : vector<8x64xf32>, vector<64x128xf32>, vector<8x128xf32> -> vector<8x128xf32>
    %c1_25 = arith.constant 1 : index
    %c0_26 = arith.constant 0 : index
    %c0_27 = arith.constant 0 : index
    %52 = vector.load %arg4[%c1_25, %c0_26, %c0_27] : memref<2x1x128xf32, #tpu.memory_space<vmem>>, vector<1x1x128xf32>
    %53 = vector.shape_cast %52 : vector<1x1x128xf32> to vector<1x128xf32>
    %54 = vector.broadcast %53 : vector<1x128xf32> to vector<8x128xf32>
    %55 = arith.addf %51, %54 : vector<8x128xf32>
    %56 = vector.extract_strided_slice %55 {offsets = [0, 0], sizes = [8, 32], strides = [1, 1]} : vector<8x128xf32> to vector<8x32xf32>
    %57 = arith.negf %56 : vector<8x32xf32>
    %58 = math.exp %57 : vector<8x32xf32>
    %cst_28 = arith.constant 1.000000e+00 : f32
    %59 = vector.broadcast %cst_28 : f32 to vector<8x32xf32>
    %60 = arith.addf %59, %58 : vector<8x32xf32>
    %61 = arith.divf %59, %60 : vector<8x32xf32>
    %62 = vector.extract_strided_slice %55 {offsets = [0, 32], sizes = [8, 32], strides = [1, 1]} : vector<8x128xf32> to vector<8x32xf32>
    %63 = arith.negf %62 : vector<8x32xf32>
    %64 = math.exp %63 : vector<8x32xf32>
    %cst_29 = arith.constant 1.000000e+00 : f32
    %65 = vector.broadcast %cst_29 : f32 to vector<8x32xf32>
    %66 = arith.addf %65, %64 : vector<8x32xf32>
    %67 = arith.divf %65, %66 : vector<8x32xf32>
    %68 = vector.extract_strided_slice %55 {offsets = [0, 64], sizes = [8, 32], strides = [1, 1]} : vector<8x128xf32> to vector<8x32xf32>
    %69 = math.tanh %68 : vector<8x32xf32>
    %70 = vector.extract_strided_slice %55 {offsets = [0, 96], sizes = [8, 32], strides = [1, 1]} : vector<8x128xf32> to vector<8x32xf32>
    %71 = arith.negf %70 : vector<8x32xf32>
    %72 = math.exp %71 : vector<8x32xf32>
    %cst_30 = arith.constant 1.000000e+00 : f32
    %73 = vector.broadcast %cst_30 : f32 to vector<8x32xf32>
    %74 = arith.addf %73, %72 : vector<8x32xf32>
    %75 = arith.divf %73, %74 : vector<8x32xf32>
    %76 = arith.mulf %67, %14 : vector<8x32xf32>
    %77 = arith.mulf %61, %69 : vector<8x32xf32>
    %78 = arith.addf %76, %77 : vector<8x32xf32>
    %79 = math.tanh %78 : vector<8x32xf32>
    %80 = arith.mulf %75, %79 : vector<8x32xf32>
    %81 = vector.broadcast %4 : vector<8x1xf32> to vector<8x32xf32>
    %82 = arith.mulf %81, %80 : vector<8x32xf32>
    %83 = tpu.concatenate %82, %47 in 1 : vector<8x32xf32>, vector<8x32xf32> -> vector<8x64xf32>
    %c0_31 = arith.constant 0 : index
    %c0_32 = arith.constant 0 : index
    %c0_33 = arith.constant 0 : index
    %84 = vector.load %arg3[%c0_31, %c0_32, %c0_33] : memref<2x64x128xf32, #tpu.memory_space<vmem>>, vector<1x64x128xf32>
    %85 = vector.shape_cast %84 : vector<1x64x128xf32> to vector<64x128xf32>
    %cst_34 = arith.constant dense<0.000000e+00> : vector<8x128xf32>
    %86 = tpu.matmul %83, %85, %cst_34 {dimension_numbers = #tpu.dot_dimension_numbers<[1], [0], [0], [1], [0, 0, 1, 1], [], []>} : vector<8x64xf32>, vector<64x128xf32>, vector<8x128xf32> -> vector<8x128xf32>
    %87 = arith.addf %10, %86 : vector<8x128xf32>
    %88 = vector.extract_strided_slice %87 {offsets = [0, 0], sizes = [8, 32], strides = [1, 1]} : vector<8x128xf32> to vector<8x32xf32>
    %89 = arith.negf %88 : vector<8x32xf32>
    %90 = math.exp %89 : vector<8x32xf32>
    %cst_35 = arith.constant 1.000000e+00 : f32
    %91 = vector.broadcast %cst_35 : f32 to vector<8x32xf32>
    %92 = arith.addf %91, %90 : vector<8x32xf32>
    %93 = arith.divf %91, %92 : vector<8x32xf32>
    %94 = vector.extract_strided_slice %87 {offsets = [0, 32], sizes = [8, 32], strides = [1, 1]} : vector<8x128xf32> to vector<8x32xf32>
    %95 = arith.negf %94 : vector<8x32xf32>
    %96 = math.exp %95 : vector<8x32xf32>
    %cst_36 = arith.constant 1.000000e+00 : f32
    %97 = vector.broadcast %cst_36 : f32 to vector<8x32xf32>
    %98 = arith.addf %97, %96 : vector<8x32xf32>
    %99 = arith.divf %97, %98 : vector<8x32xf32>
    %100 = vector.extract_strided_slice %87 {offsets = [0, 64], sizes = [8, 32], strides = [1, 1]} : vector<8x128xf32> to vector<8x32xf32>
    %101 = math.tanh %100 : vector<8x32xf32>
    %102 = vector.extract_strided_slice %87 {offsets = [0, 96], sizes = [8, 32], strides = [1, 1]} : vector<8x128xf32> to vector<8x32xf32>
    %103 = arith.negf %102 : vector<8x32xf32>
    %104 = math.exp %103 : vector<8x32xf32>
    %cst_37 = arith.constant 1.000000e+00 : f32
    %105 = vector.broadcast %cst_37 : f32 to vector<8x32xf32>
    %106 = arith.addf %105, %104 : vector<8x32xf32>
    %107 = arith.divf %105, %106 : vector<8x32xf32>
    %108 = arith.mulf %99, %45 : vector<8x32xf32>
    %109 = arith.mulf %93, %101 : vector<8x32xf32>
    %110 = arith.addf %108, %109 : vector<8x32xf32>
    %111 = math.tanh %110 : vector<8x32xf32>
    %112 = arith.mulf %107, %111 : vector<8x32xf32>
    %113 = tpu.concatenate %112, %80 in 1 : vector<8x32xf32>, vector<8x32xf32> -> vector<8x64xf32>
    %c1_38 = arith.constant 1 : index
    %c0_39 = arith.constant 0 : index
    %c0_40 = arith.constant 0 : index
    %114 = vector.load %arg3[%c1_38, %c0_39, %c0_40] : memref<2x64x128xf32, #tpu.memory_space<vmem>>, vector<1x64x128xf32>
    %115 = vector.shape_cast %114 : vector<1x64x128xf32> to vector<64x128xf32>
    %cst_41 = arith.constant dense<0.000000e+00> : vector<8x128xf32>
    %116 = tpu.matmul %113, %115, %cst_41 {dimension_numbers = #tpu.dot_dimension_numbers<[1], [0], [0], [1], [0, 0, 1, 1], [], []>} : vector<8x64xf32>, vector<64x128xf32>, vector<8x128xf32> -> vector<8x128xf32>
    %c1_42 = arith.constant 1 : index
    %c0_43 = arith.constant 0 : index
    %c0_44 = arith.constant 0 : index
    %117 = vector.load %arg4[%c1_42, %c0_43, %c0_44] : memref<2x1x128xf32, #tpu.memory_space<vmem>>, vector<1x1x128xf32>
    %118 = vector.shape_cast %117 : vector<1x1x128xf32> to vector<1x128xf32>
    %119 = vector.broadcast %118 : vector<1x128xf32> to vector<8x128xf32>
    %120 = arith.addf %116, %119 : vector<8x128xf32>
    %121 = vector.extract_strided_slice %120 {offsets = [0, 0], sizes = [8, 32], strides = [1, 1]} : vector<8x128xf32> to vector<8x32xf32>
    %122 = arith.negf %121 : vector<8x32xf32>
    %123 = math.exp %122 : vector<8x32xf32>
    %cst_45 = arith.constant 1.000000e+00 : f32
    %124 = vector.broadcast %cst_45 : f32 to vector<8x32xf32>
    %125 = arith.addf %124, %123 : vector<8x32xf32>
    %126 = arith.divf %124, %125 : vector<8x32xf32>
    %127 = vector.extract_strided_slice %120 {offsets = [0, 32], sizes = [8, 32], strides = [1, 1]} : vector<8x128xf32> to vector<8x32xf32>
    %128 = arith.negf %127 : vector<8x32xf32>
    %129 = math.exp %128 : vector<8x32xf32>
    %cst_46 = arith.constant 1.000000e+00 : f32
    %130 = vector.broadcast %cst_46 : f32 to vector<8x32xf32>
    %131 = arith.addf %130, %129 : vector<8x32xf32>
    %132 = arith.divf %130, %131 : vector<8x32xf32>
    %133 = vector.extract_strided_slice %120 {offsets = [0, 64], sizes = [8, 32], strides = [1, 1]} : vector<8x128xf32> to vector<8x32xf32>
    %134 = math.tanh %133 : vector<8x32xf32>
    %135 = vector.extract_strided_slice %120 {offsets = [0, 96], sizes = [8, 32], strides = [1, 1]} : vector<8x128xf32> to vector<8x32xf32>
    %136 = arith.negf %135 : vector<8x32xf32>
    %137 = math.exp %136 : vector<8x32xf32>
    %cst_47 = arith.constant 1.000000e+00 : f32
    %138 = vector.broadcast %cst_47 : f32 to vector<8x32xf32>
    %139 = arith.addf %138, %137 : vector<8x32xf32>
    %140 = arith.divf %138, %139 : vector<8x32xf32>
    %141 = arith.mulf %132, %78 : vector<8x32xf32>
    %142 = arith.mulf %126, %134 : vector<8x32xf32>
    %143 = arith.addf %141, %142 : vector<8x32xf32>
    %144 = math.tanh %143 : vector<8x32xf32>
    %145 = arith.mulf %140, %144 : vector<8x32xf32>
    %146 = vector.broadcast %4 : vector<8x1xf32> to vector<8x32xf32>
    %147 = arith.mulf %146, %145 : vector<8x32xf32>
    %148 = tpu.concatenate %147, %112 in 1 : vector<8x32xf32>, vector<8x32xf32> -> vector<8x64xf32>
    %c0_48 = arith.constant 0 : index
    %c0_49 = arith.constant 0 : index
    %c0_50 = arith.constant 0 : index
    %149 = vector.load %arg3[%c0_48, %c0_49, %c0_50] : memref<2x64x128xf32, #tpu.memory_space<vmem>>, vector<1x64x128xf32>
    %150 = vector.shape_cast %149 : vector<1x64x128xf32> to vector<64x128xf32>
    %cst_51 = arith.constant dense<0.000000e+00> : vector<8x128xf32>
    %151 = tpu.matmul %148, %150, %cst_51 {dimension_numbers = #tpu.dot_dimension_numbers<[1], [0], [0], [1], [0, 0, 1, 1], [], []>} : vector<8x64xf32>, vector<64x128xf32>, vector<8x128xf32> -> vector<8x128xf32>
    %152 = arith.addf %10, %151 : vector<8x128xf32>
    %153 = vector.extract_strided_slice %152 {offsets = [0, 0], sizes = [8, 32], strides = [1, 1]} : vector<8x128xf32> to vector<8x32xf32>
    %154 = arith.negf %153 : vector<8x32xf32>
    %155 = math.exp %154 : vector<8x32xf32>
    %cst_52 = arith.constant 1.000000e+00 : f32
    %156 = vector.broadcast %cst_52 : f32 to vector<8x32xf32>
    %157 = arith.addf %156, %155 : vector<8x32xf32>
    %158 = arith.divf %156, %157 : vector<8x32xf32>
    %159 = vector.extract_strided_slice %152 {offsets = [0, 32], sizes = [8, 32], strides = [1, 1]} : vector<8x128xf32> to vector<8x32xf32>
    %160 = arith.negf %159 : vector<8x32xf32>
    %161 = math.exp %160 : vector<8x32xf32>
    %cst_53 = arith.constant 1.000000e+00 : f32
    %162 = vector.broadcast %cst_53 : f32 to vector<8x32xf32>
    %163 = arith.addf %162, %161 : vector<8x32xf32>
    %164 = arith.divf %162, %163 : vector<8x32xf32>
    %165 = vector.extract_strided_slice %152 {offsets = [0, 64], sizes = [8, 32], strides = [1, 1]} : vector<8x128xf32> to vector<8x32xf32>
    %166 = math.tanh %165 : vector<8x32xf32>
    %167 = vector.extract_strided_slice %152 {offsets = [0, 96], sizes = [8, 32], strides = [1, 1]} : vector<8x128xf32> to vector<8x32xf32>
    %168 = arith.negf %167 : vector<8x32xf32>
    %169 = math.exp %168 : vector<8x32xf32>
    %cst_54 = arith.constant 1.000000e+00 : f32
    %170 = vector.broadcast %cst_54 : f32 to vector<8x32xf32>
    %171 = arith.addf %170, %169 : vector<8x32xf32>
    %172 = arith.divf %170, %171 : vector<8x32xf32>
    %173 = arith.mulf %164, %110 : vector<8x32xf32>
    %174 = arith.mulf %158, %166 : vector<8x32xf32>
    %175 = arith.addf %173, %174 : vector<8x32xf32>
    %176 = math.tanh %175 : vector<8x32xf32>
    %177 = arith.mulf %172, %176 : vector<8x32xf32>
    %178 = tpu.concatenate %177, %145 in 1 : vector<8x32xf32>, vector<8x32xf32> -> vector<8x64xf32>
    %c1_55 = arith.constant 1 : index
    %c0_56 = arith.constant 0 : index
    %c0_57 = arith.constant 0 : index
    %179 = vector.load %arg3[%c1_55, %c0_56, %c0_57] : memref<2x64x128xf32, #tpu.memory_space<vmem>>, vector<1x64x128xf32>
    %180 = vector.shape_cast %179 : vector<1x64x128xf32> to vector<64x128xf32>
    %cst_58 = arith.constant dense<0.000000e+00> : vector<8x128xf32>
    %181 = tpu.matmul %178, %180, %cst_58 {dimension_numbers = #tpu.dot_dimension_numbers<[1], [0], [0], [1], [0, 0, 1, 1], [], []>} : vector<8x64xf32>, vector<64x128xf32>, vector<8x128xf32> -> vector<8x128xf32>
    %c1_59 = arith.constant 1 : index
    %c0_60 = arith.constant 0 : index
    %c0_61 = arith.constant 0 : index
    %182 = vector.load %arg4[%c1_59, %c0_60, %c0_61] : memref<2x1x128xf32, #tpu.memory_space<vmem>>, vector<1x1x128xf32>
    %183 = vector.shape_cast %182 : vector<1x1x128xf32> to vector<1x128xf32>
    %184 = vector.broadcast %183 : vector<1x128xf32> to vector<8x128xf32>
    %185 = arith.addf %181, %184 : vector<8x128xf32>
    %186 = vector.extract_strided_slice %185 {offsets = [0, 0], sizes = [8, 32], strides = [1, 1]} : vector<8x128xf32> to vector<8x32xf32>
    %187 = arith.negf %186 : vector<8x32xf32>
    %188 = math.exp %187 : vector<8x32xf32>
    %cst_62 = arith.constant 1.000000e+00 : f32
    %189 = vector.broadcast %cst_62 : f32 to vector<8x32xf32>
    %190 = arith.addf %189, %188 : vector<8x32xf32>
    %191 = arith.divf %189, %190 : vector<8x32xf32>
    %192 = vector.extract_strided_slice %185 {offsets = [0, 32], sizes = [8, 32], strides = [1, 1]} : vector<8x128xf32> to vector<8x32xf32>
    %193 = arith.negf %192 : vector<8x32xf32>
    %194 = math.exp %193 : vector<8x32xf32>
    %cst_63 = arith.constant 1.000000e+00 : f32
    %195 = vector.broadcast %cst_63 : f32 to vector<8x32xf32>
    %196 = arith.addf %195, %194 : vector<8x32xf32>
    %197 = arith.divf %195, %196 : vector<8x32xf32>
    %198 = vector.extract_strided_slice %185 {offsets = [0, 64], sizes = [8, 32], strides = [1, 1]} : vector<8x128xf32> to vector<8x32xf32>
    %199 = math.tanh %198 : vector<8x32xf32>
    %200 = vector.extract_strided_slice %185 {offsets = [0, 96], sizes = [8, 32], strides = [1, 1]} : vector<8x128xf32> to vector<8x32xf32>
    %201 = arith.negf %200 : vector<8x32xf32>
    %202 = math.exp %201 : vector<8x32xf32>
    %cst_64 = arith.constant 1.000000e+00 : f32
    %203 = vector.broadcast %cst_64 : f32 to vector<8x32xf32>
    %204 = arith.addf %203, %202 : vector<8x32xf32>
    %205 = arith.divf %203, %204 : vector<8x32xf32>
    %206 = arith.mulf %197, %143 : vector<8x32xf32>
    %207 = arith.mulf %191, %199 : vector<8x32xf32>
    %208 = arith.addf %206, %207 : vector<8x32xf32>
    %209 = math.tanh %208 : vector<8x32xf32>
    %210 = arith.mulf %205, %209 : vector<8x32xf32>
    %c0_65 = arith.constant 0 : index
    %c0_66 = arith.constant 0 : index
    %211 = vector.load %arg5[%c0_65, %c0_66] : memref<8x64xf32, #tpu.memory_space<vmem>>, vector<8x32xf32>
    tpu.vector_store %arg5[%c0_65, %c0_66], %210 {strides = array<i32>} : memref<8x64xf32, #tpu.memory_space<vmem>>, vector<8x32xf32>,
    %c0_67 = arith.constant 0 : index
    %c32 = arith.constant 32 : index
    %212 = vector.load %arg5[%c0_67, %c32] : memref<8x64xf32, #tpu.memory_space<vmem>>, vector<8x32xf32>
    tpu.vector_store %arg5[%c0_67, %c32], %210 {strides = array<i32>} : memref<8x64xf32, #tpu.memory_space<vmem>>, vector<8x32xf32>,
    return
  }
}

</mosaic_0001>

<llo_original>
// kernel: set2set_pallas.1
$region0: #{set2set_pallas.1}
  #allocation0 [shape = 'u32[]', space=smem, size = 0x4, offset = 0x4, fixed_abs, tag = 'smem constant byte address 0x4 - core index']
  #allocation1 [shape = 'u32[72,128]{1,0:T(1,128)}', space=vmem, size = 0x9000, scoped, tag = 'internal scratch']
  %s0 = inlined_call_operand.hbm [shape: f32[32,32], index: 0, kind: input, shape index: {}]
  %s1 = inlined_call_operand.vmem [shape: f32[8,32], index: 1, kind: input, shape index: {}]
  %s2 = inlined_call_operand.hbm [shape: f32[32,128], index: 2, kind: input, shape index: {}]
  %s3 = inlined_call_operand.hbm [shape: f32[2,64,128], index: 3, kind: input, shape index: {}]
  %s4 = inlined_call_operand.vmem [shape: f32[2,1,128], index: 4, kind: input, shape index: {}]
  %s5 = inlined_call_operand.vmem [shape: f32[8,64], index: 5, kind: output, shape index: {}]
  %s6 = sld [smem:[#allocation0]]
  $region42: #{set2set_pallas.1} parent=0
    _
  %s8 = ssub.s32 1, %s6
  %s9 = scalar_select 0, %s8, %s6
  $region1: #{set2set_pallas.1} parent=0
    #allocation2 [shape = 'u8[16384]{0}', space=vmem, size = 0x4000, scoped, tag = 'input window, operand 0, single buffered']
    #allocation3 [shape = 's32[1]{0}', space=sflag, size = 0x4, scoped, tag = 'scoped memory for set2set_pallas.1']
    #allocation4 [shape = 'u8[16384]{0}', space=vmem, size = 0x4000, scoped, tag = 'input window, operand 2, single buffered']
    #allocation5 [shape = 's32[1]{0}', space=sflag, size = 0x4, scoped, tag = 'scoped memory for set2set_pallas.1']
    #allocation6 [shape = 'u8[65536]{0}', space=vmem, size = 0x10000, scoped, tag = 'input window, operand 3, single buffered']
    %10 = vsyncpa [#allocation3], 0
    %11 = vsyncpa [#allocation5], 0
    // Predicated region
    $region2: #{set2set_pallas.1} parent=1 // pred_check
      _
    $region3: #{set2set_pallas.1} parent=1 // pred_check_branch
      %13 = sbr.rel (0) target = $region5
    $region4: #{set2set_pallas.1} parent=1 // pred_region
      %15 = vsyncadd [#allocation3], 0
      %s16 = sshll.u32 %s0, 4
      %s17 = int_to_ptr.hbm [resolvable:$true] %s16
      %s18 = sshll.u32 [#allocation2], 4
      %s19 = int_to_ptr.vmem [resolvable:$true] %s18
      %24 = dma.hbm_to_vmem [thread:$0]  %s17, 512, %s19, [#allocation3], 128, 128, 8
    $region5: #{set2set_pallas.1} parent=1 // pred_fallthru
      _
    // Predicated region
    $region6: #{set2set_pallas.1} parent=1 // pred_check
      _
    $region7: #{set2set_pallas.1} parent=1 // pred_check_branch
      %26 = sbr.rel (0) target = $region9
    $region8: #{set2set_pallas.1} parent=1 // pred_region
      _
    $region9: #{set2set_pallas.1} parent=1 // pred_fallthru
      _
    // Predicated region
    $region10: #{set2set_pallas.1} parent=1 // pred_check
      _
    $region11: #{set2set_pallas.1} parent=1 // pred_check_branch
      %28 = sbr.rel (0) target = $region13
    $region12: #{set2set_pallas.1} parent=1 // pred_region
      %30 = vsyncadd [#allocation5], 0
      %s31 = sshll.u32 %s2, 4
      %s32 = int_to_ptr.hbm [resolvable:$true] %s31
      %s33 = sshll.u32 [#allocation4], 4
      %s34 = int_to_ptr.vmem [resolvable:$true] %s33
      %39 = dma.hbm_to_vmem [thread:$0]  %s32, 512, %s34, [#allocation5], 128, 128, 8
    $region13: #{set2set_pallas.1} parent=1 // pred_fallthru
      _
    // Predicated region
    $region14: #{set2set_pallas.1} parent=1 // pred_check
      _
    $region15: #{set2set_pallas.1} parent=1 // pred_check_branch
      %41 = sbr.rel (0) target = $region17
    $region16: #{set2set_pallas.1} parent=1 // pred_region
      %43 = vsyncadd [#allocation5], 0
      %s44 = sshll.u32 %s3, 4
      %s45 = int_to_ptr.hbm [resolvable:$true] %s44
      %s46 = sshll.u32 [#allocation6], 4
      %s47 = int_to_ptr.vmem [resolvable:$true] %s46
      %52 = dma.hbm_to_vmem [thread:$0]  %s45, 2048, %s47, [#allocation5], 128, 128, 8
    $region17: #{set2set_pallas.1} parent=1 // pred_fallthru
      _
    // Predicated region
    $region18: #{set2set_pallas.1} parent=1 // pred_check
      _
    $region19: #{set2set_pallas.1} parent=1 // pred_check_branch
      %54 = sbr.rel (0) target = $region21
    $region20: #{set2set_pallas.1} parent=1 // pred_region
      _
    $region21: #{set2set_pallas.1} parent=1 // pred_fallthru
      _
    // Predicated region
    $region22: #{set2set_pallas.1} parent=1 // pred_check
      _
    $region23: #{set2set_pallas.1} parent=1 // pred_check_branch
      %56 = sbr.rel (0) target = $region25
    $region24: #{set2set_pallas.1} parent=1 // pred_region
      %58 = dma.done [#allocation3], 512
    $region25: #{set2set_pallas.1} parent=1 // pred_fallthru
      _
    // Predicated region
    $region26: #{set2set_pallas.1} parent=1 // pred_check
      _
    $region27: #{set2set_pallas.1} parent=1 // pred_check_branch
      %60 = sbr.rel (0) target = $region29
    $region28: #{set2set_pallas.1} parent=1 // pred_region
      %62 = dma.done [#allocation5], 512
    $region29: #{set2set_pallas.1} parent=1 // pred_fallthru
      _
    // Predicated region
    $region30: #{set2set_pallas.1} parent=1 // pred_check
      _
    $region31: #{set2set_pallas.1} parent=1 // pred_check_branch
      %64 = sbr.rel (0) target = $region33
    $region32: #{set2set_pallas.1} parent=1 // pred_region
      %66 = dma.done [#allocation5], 2048
    $region33: #{set2set_pallas.1} parent=1 // pred_fallthru
      _
    %v67 = vld [vmem:[#allocation2] sm:$0xff]
    %v68 = vld [vmem:[#allocation2 + $0x8] sm:$0xff]
    %v69 = vld [vmem:[#allocation2 + $0x10] sm:$0xff]
    %v70 = vld [vmem:[#allocation2 + $0x18] sm:$0xff]
    %v71 = vld [vmem:[%s1] sm:$0xff]
    %vm72 = vcmask 261120
    %v74 = vsel %vm72, %v71, 0
    %76 = vmatpush.msra.mxu0 0.0
    %77 = vmatpush.msra.mxu0 0.0
    %78 = vmatpush.msra.mxu0 0.0
    %79 = vmatpush.msra.mxu0 0.0
    %80 = vmatpush.msra.mxu0 0.0
    %81 = vmatpush.msra.mxu0 0.0
    %82 = vmatpush.msra.mxu0 0.0
    %83 = vmatpush.msra.mxu0 0.0
    %84 = vmatpush.msra.mxu0 0.0
    %85 = vmatpush.msra.mxu0 0.0
    %86 = vmatpush.msra.mxu0 0.0
    %87 = vmatpush.msra.mxu0 0.0
    %88 = vmatpush.msra.mxu0 %v70
    %89 = vmatpush.msra.mxu0 %v69
    %90 = vmatpush.msra.mxu0 %v68
    %91 = vmatpush.msra.mxu0 %v67
    %92 = vmatmul.f32.gmra.mxu0 %v74
    %v93 = vpop.f32.mrf.mxu0
    %v94 = vadd.f32 0.0, %v93
    %95 = vdwg.mxu0
    %v96 = vsel %vm72, %v71, 0.0
    %97 = vadd.xlane.f32.xlu0 %v96
    %v98 = vpop.xlane.xlu0 %97
    %v99 = vld [vmem:[#allocation4] sm:$0xff]
    %v100 = vld [vmem:[#allocation4 + $0x8] sm:$0xff]
    %v101 = vld [vmem:[#allocation4 + $0x10] sm:$0xff]
    %v102 = vld [vmem:[#allocation4 + $0x18] sm:$0xff]
    %v103 = vld [vmem:[%s4] sm:$0x1]
    %v105 = vperm.slane %v103, 0
    %v108 = vsel %vm72, %v94, 0
    %110 = vmatpush.msra.mxu0 0.0
    %111 = vmatpush.msra.mxu0 0.0
    %112 = vmatpush.msra.mxu0 0.0
    %113 = vmatpush.msra.mxu0 0.0
    %114 = vmatpush.msra.mxu0 0.0
    %115 = vmatpush.msra.mxu0 0.0
    %116 = vmatpush.msra.mxu0 0.0
    %117 = vmatpush.msra.mxu0 0.0
    %118 = vmatpush.msra.mxu0 0.0
    %119 = vmatpush.msra.mxu0 0.0
    %120 = vmatpush.msra.mxu0 0.0
    %121 = vmatpush.msra.mxu0 0.0
    %122 = vmatpush.msra.mxu0 %v102
    %123 = vmatpush.msra.mxu0 %v101
    %124 = vmatpush.msra.mxu0 %v100
    %125 = vmatpush.msra.mxu0 %v99
    %126 = vmatmul.f32.gmra.mxu0 %v108
    %v127 = vpop.f32.mrf.mxu0
    %v128 = vadd.f32 %v105, %v127
    %129 = vdwg.mxu0
    %v130 = vmul.f32 %v98, 0.0
    %v131 = vsel %vm72, %v130, 0.0
    %v132 = vld [vmem:[#allocation6] sm:$0xff]
    %v133 = vld [vmem:[#allocation6 + $0x8] sm:$0xff]
    %v134 = vld [vmem:[#allocation6 + $0x10] sm:$0xff]
    %v135 = vld [vmem:[#allocation6 + $0x18] sm:$0xff]
    %v136 = vld [vmem:[#allocation6 + $0x20] sm:$0xff]
    %v137 = vld [vmem:[#allocation6 + $0x28] sm:$0xff]
    %v138 = vld [vmem:[#allocation6 + $0x30] sm:$0xff]
    %v139 = vld [vmem:[#allocation6 + $0x38] sm:$0xff]
    %vm140 = vcmask 523264
    %v142 = vsel %vm140, %v131, 0
    %144 = vmatpush.msra.mxu0 0.0
    %145 = vmatpush.msra.mxu0 0.0
    %146 = vmatpush.msra.mxu0 0.0
    %147 = vmatpush.msra.mxu0 0.0
    %148 = vmatpush.msra.mxu0 0.0
    %149 = vmatpush.msra.mxu0 0.0
    %150 = vmatpush.msra.mxu0 0.0
    %151 = vmatpush.msra.mxu0 0.0
    %152 = vmatpush.msra.mxu0 %v139
    %153 = vmatpush.msra.mxu0 %v138
    %154 = vmatpush.msra.mxu0 %v137
    %155 = vmatpush.msra.mxu0 %v136
    %156 = vmatpush.msra.mxu0 %v135
    %157 = vmatpush.msra.mxu0 %v134
    %158 = vmatpush.msra.mxu0 %v133
    %159 = vmatpush.msra.mxu0 %v132
    %160 = vmatmul.f32.gmra.mxu0 %v142
    %v161 = vpop.f32.mrf.mxu0
    %v162 = vadd.f32 0.0, %v161
    %163 = vdwg.mxu0
    %v164 = vadd.f32 %v128, %v162
    %v165 = vxor.u32 %v164, 2147483648
    %v166 = vmul.f32 %v165, 1.442695
    %v167 = vpow.pop %v166
    %v168 = vadd.f32 %v167, 1.0
    %v169 = vrcp.pop %v168
    %v170 = vmul.f32 %v168, %v169
    %v171 = vsub.f32 1.0, %v170
    %v172 = vmul.f32 %v169, %v171
    %v173 = vadd.f32 %v169, %v172
    %vm174 = vweird.f32 %v168
    %vm175 = vweird.f32 %v169
    %vm176 = vmor %vm174, %vm175
    %v177 = vsel %vm176, %v169, %v173
    %v178 = vand.u32 2147483647, %v168
    %vm179 = vcmp.eq.f32.partialorder %v178, 8.507059e+37
    %v180 = vand.u32 %v168, 2147483648
    %v181 = vor.u32 1.1754944e-38, %v180
    %v182 = vsel %vm179, %v181, %v177
    %v183 = vmul.f32 1.0, %v182
    %v184 = vtanh.pop %v164
    %v185 = vmul.f32 %v183, 0.0
    %187 = vrot.lane.b32.xlu0 %v184, 64
    %v188 = vpop.permute.xlu0 %187
    %v190 = vmul.f32 %v183, %v188
    %192 = vrot.lane.b32.xlu0 %v190, 32
    %v193 = vpop.permute.xlu0 %192
    %v195 = vadd.f32 %v185, %v193
    %v196 = vtanh.pop %v195
    %198 = vrot.lane.b32.xlu0 %v196, 64
    %v199 = vpop.permute.xlu0 %198
    %v201 = vmul.f32 %v183, %v199
    %203 = vrot.lane.b32.xlu0 %v201, 32
    %v204 = vpop.permute.xlu0 %203
    %v206 = vsel %vm72, %v204, 0.0
    %s207 = scalar_lea.vmem [#allocation6], 64
    %v208 = vld [vmem:[%s207] sm:$0xff]
    %v209 = vld [vmem:[%s207 + $0x8] sm:$0xff]
    %v210 = vld [vmem:[%s207 + $0x10] sm:$0xff]
    %v211 = vld [vmem:[%s207 + $0x18] sm:$0xff]
    %v212 = vld [vmem:[%s207 + $0x20] sm:$0xff]
    %v213 = vld [vmem:[%s207 + $0x28] sm:$0xff]
    %v214 = vld [vmem:[%s207 + $0x30] sm:$0xff]
    %v215 = vld [vmem:[%s207 + $0x38] sm:$0xff]
    %s216 = scalar_lea.vmem %s4, 1
    %v217 = vld [vmem:[%s216] sm:$0x1]
    %v219 = vperm.slane %v217, 0
    %v222 = vsel %vm140, %v206, 0
    %224 = vmatpush.msra.mxu0 0.0
    %225 = vmatpush.msra.mxu0 0.0
    %226 = vmatpush.msra.mxu0 0.0
    %227 = vmatpush.msra.mxu0 0.0
    %228 = vmatpush.msra.mxu0 0.0
    %229 = vmatpush.msra.mxu0 0.0
    %230 = vmatpush.msra.mxu0 0.0
    %231 = vmatpush.msra.mxu0 0.0
    %232 = vmatpush.msra.mxu0 %v215
    %233 = vmatpush.msra.mxu0 %v214
    %234 = vmatpush.msra.mxu0 %v213
    %235 = vmatpush.msra.mxu0 %v212
    %236 = vmatpush.msra.mxu0 %v211
    %237 = vmatpush.msra.mxu0 %v210
    %238 = vmatpush.msra.mxu0 %v209
    %239 = vmatpush.msra.mxu0 %v208
    %240 = vmatmul.f32.gmra.mxu0 %v222
    %v241 = vpop.f32.mrf.mxu0
    %v242 = vadd.f32 %v219, %v241
    %243 = vdwg.mxu0
    %v244 = vxor.u32 %v242, 2147483648
    %v245 = vmul.f32 %v244, 1.442695
    %v246 = vpow.pop %v245
    %v247 = vadd.f32 %v246, 1.0
    %v248 = vrcp.pop %v247
    %v249 = vmul.f32 %v247, %v248
    %v250 = vsub.f32 1.0, %v249
    %v251 = vmul.f32 %v248, %v250
    %v252 = vadd.f32 %v248, %v251
    %vm253 = vweird.f32 %v247
    %vm254 = vweird.f32 %v248
    %vm255 = vmor %vm253, %vm254
    %v256 = vsel %vm255, %v248, %v252
    %v257 = vand.u32 2147483647, %v247
    %vm258 = vcmp.eq.f32.partialorder %v257, 8.507059e+37
    %v259 = vand.u32 %v247, 2147483648
    %v260 = vor.u32 1.1754944e-38, %v259
    %v261 = vsel %vm258, %v260, %v256
    %v262 = vmul.f32 1.0, %v261
    %v263 = vtanh.pop %v242
    %v264 = vmul.f32 %v262, 0.0
    %266 = vrot.lane.b32.xlu0 %v263, 64
    %v267 = vpop.permute.xlu0 %266
    %v269 = vmul.f32 %v262, %v267
    %271 = vrot.lane.b32.xlu0 %v269, 32
    %v272 = vpop.permute.xlu0 %271
    %v274 = vadd.f32 %v264, %v272
    %v275 = vtanh.pop %v274
    %277 = vrot.lane.b32.xlu0 %v275, 64
    %v278 = vpop.permute.xlu0 %277
    %v280 = vmul.f32 %v262, %v278
    %v281 = vmul.f32 %v98, %v280
    %283 = vrot.lane.b32.xlu0 %v281, 32
    %v284 = vpop.permute.xlu0 %283
    %286 = vrot.lane.b32.xlu0 %v201, 64
    %v287 = vpop.permute.xlu0 %286
    %v289 = vsel %vm72, %v284, %v287
    %v291 = vsel %vm140, %v289, 0
    %293 = vmatpush.msra.mxu0 0.0
    %294 = vmatpush.msra.mxu0 0.0
    %295 = vmatpush.msra.mxu0 0.0
    %296 = vmatpush.msra.mxu0 0.0
    %297 = vmatpush.msra.mxu0 0.0
    %298 = vmatpush.msra.mxu0 0.0
    %299 = vmatpush.msra.mxu0 0.0
    %300 = vmatpush.msra.mxu0 0.0
    %301 = vmatpush.msra.mxu0 %v139
    %302 = vmatpush.msra.mxu0 %v138
    %303 = vmatpush.msra.mxu0 %v137
    %304 = vmatpush.msra.mxu0 %v136
    %305 = vmatpush.msra.mxu0 %v135
    %306 = vmatpush.msra.mxu0 %v134
    %307 = vmatpush.msra.mxu0 %v133
    %308 = vmatpush.msra.mxu0 %v132
    %309 = vmatmul.f32.gmra.mxu0 %v291
    %v310 = vpop.f32.mrf.mxu0
    %v311 = vadd.f32 0.0, %v310
    %312 = vdwg.mxu0
    %v313 = vadd.f32 %v128, %v311
    %v314 = vxor.u32 %v313, 2147483648
    %v315 = vmul.f32 %v314, 1.442695
    %v316 = vpow.pop %v315
    %v317 = vadd.f32 %v316, 1.0
    %v318 = vrcp.pop %v317
    %v319 = vmul.f32 %v317, %v318
    %v320 = vsub.f32 1.0, %v319
    %v321 = vmul.f32 %v318, %v320
    %v322 = vadd.f32 %v318, %v321
    %vm323 = vweird.f32 %v317
    %vm324 = vweird.f32 %v318
    %vm325 = vmor %vm323, %vm324
    %v326 = vsel %vm325, %v318, %v322
    %v327 = vand.u32 2147483647, %v317
    %vm328 = vcmp.eq.f32.partialorder %v327, 8.507059e+37
    %v329 = vand.u32 %v317, 2147483648
    %v330 = vor.u32 1.1754944e-38, %v329
    %v331 = vsel %vm328, %v330, %v326
    %v332 = vmul.f32 1.0, %v331
    %v333 = vtanh.pop %v313
    %v334 = vmul.f32 %v332, %v195
    %336 = vrot.lane.b32.xlu0 %v333, 64
    %v337 = vpop.permute.xlu0 %336
    %v339 = vmul.f32 %v332, %v337
    %341 = vrot.lane.b32.xlu0 %v339, 32
    %v342 = vpop.permute.xlu0 %341
    %v344 = vadd.f32 %v334, %v342
    %v345 = vtanh.pop %v344
    %347 = vrot.lane.b32.xlu0 %v345, 64
    %v348 = vpop.permute.xlu0 %347
    %v350 = vmul.f32 %v332, %v348
    %352 = vrot.lane.b32.xlu0 %v350, 32
    %v353 = vpop.permute.xlu0 %352
    %356 = vrot.lane.b32.xlu0 %v280, 64
    %v357 = vpop.permute.xlu0 %356
    %v359 = vsel %vm72, %v353, %v357
    %v361 = vsel %vm140, %v359, 0
    %363 = vmatpush.msra.mxu0 0.0
    %364 = vmatpush.msra.mxu0 0.0
    %365 = vmatpush.msra.mxu0 0.0
    %366 = vmatpush.msra.mxu0 0.0
    %367 = vmatpush.msra.mxu0 0.0
    %368 = vmatpush.msra.mxu0 0.0
    %369 = vmatpush.msra.mxu0 0.0
    %370 = vmatpush.msra.mxu0 0.0
    %371 = vmatpush.msra.mxu0 %v215
    %372 = vmatpush.msra.mxu0 %v214
    %373 = vmatpush.msra.mxu0 %v213
    %374 = vmatpush.msra.mxu0 %v212
    %375 = vmatpush.msra.mxu0 %v211
    %376 = vmatpush.msra.mxu0 %v210
    %377 = vmatpush.msra.mxu0 %v209
    %378 = vmatpush.msra.mxu0 %v208
    %379 = vmatmul.f32.gmra.mxu0 %v361
    %v380 = vpop.f32.mrf.mxu0
    %v381 = vadd.f32 %v219, %v380
    %382 = vdwg.mxu0
    %v383 = vxor.u32 %v381, 2147483648
    %v384 = vmul.f32 %v383, 1.442695
    %v385 = vpow.pop %v384
    %v386 = vadd.f32 %v385, 1.0
    %v387 = vrcp.pop %v386
    %v388 = vmul.f32 %v386, %v387
    %v389 = vsub.f32 1.0, %v388
    %v390 = vmul.f32 %v387, %v389
    %v391 = vadd.f32 %v387, %v390
    %vm392 = vweird.f32 %v386
    %vm393 = vweird.f32 %v387
    %vm394 = vmor %vm392, %vm393
    %v395 = vsel %vm394, %v387, %v391
    %v396 = vand.u32 2147483647, %v386
    %vm397 = vcmp.eq.f32.partialorder %v396, 8.507059e+37
    %v398 = vand.u32 %v386, 2147483648
    %v399 = vor.u32 1.1754944e-38, %v398
    %v400 = vsel %vm397, %v399, %v395
    %v401 = vmul.f32 1.0, %v400
    %v402 = vtanh.pop %v381
    %v403 = vmul.f32 %v401, %v274
    %405 = vrot.lane.b32.xlu0 %v402, 64
    %v406 = vpop.permute.xlu0 %405
    %v408 = vmul.f32 %v401, %v406
    %410 = vrot.lane.b32.xlu0 %v408, 32
    %v411 = vpop.permute.xlu0 %410
    %v413 = vadd.f32 %v403, %v411
    %v414 = vtanh.pop %v413
    %416 = vrot.lane.b32.xlu0 %v414, 64
    %v417 = vpop.permute.xlu0 %416
    %v419 = vmul.f32 %v401, %v417
    %v420 = vmul.f32 %v98, %v419
    %422 = vrot.lane.b32.xlu0 %v420, 32
    %v423 = vpop.permute.xlu0 %422
    %425 = vrot.lane.b32.xlu0 %v350, 64
    %v426 = vpop.permute.xlu0 %425
    %v428 = vsel %vm72, %v423, %v426
    %v430 = vsel %vm140, %v428, 0
    %432 = vmatpush.msra.mxu0 0.0
    %433 = vmatpush.msra.mxu0 0.0
    %434 = vmatpush.msra.mxu0 0.0
    %435 = vmatpush.msra.mxu0 0.0
    %436 = vmatpush.msra.mxu0 0.0
    %437 = vmatpush.msra.mxu0 0.0
    %438 = vmatpush.msra.mxu0 0.0
    %439 = vmatpush.msra.mxu0 0.0
    %440 = vmatpush.msra.mxu0 %v139
    %441 = vmatpush.msra.mxu0 %v138
    %442 = vmatpush.msra.mxu0 %v137
    %443 = vmatpush.msra.mxu0 %v136
    %444 = vmatpush.msra.mxu0 %v135
    %445 = vmatpush.msra.mxu0 %v134
    %446 = vmatpush.msra.mxu0 %v133
    %447 = vmatpush.msra.mxu0 %v132
    %448 = vmatmul.f32.gmra.mxu0 %v430
    %v449 = vpop.f32.mrf.mxu0
    %v450 = vadd.f32 0.0, %v449
    %451 = vdwg.mxu0
    %v452 = vadd.f32 %v128, %v450
    %v453 = vxor.u32 %v452, 2147483648
    %v454 = vmul.f32 %v453, 1.442695
    %v455 = vpow.pop %v454
    %v456 = vadd.f32 %v455, 1.0
    %v457 = vrcp.pop %v456
    %v458 = vmul.f32 %v456, %v457
    %v459 = vsub.f32 1.0, %v458
    %v460 = vmul.f32 %v457, %v459
    %v461 = vadd.f32 %v457, %v460
    %vm462 = vweird.f32 %v456
    %vm463 = vweird.f32 %v457
    %vm464 = vmor %vm462, %vm463
    %v465 = vsel %vm464, %v457, %v461
    %v466 = vand.u32 2147483647, %v456
    %vm467 = vcmp.eq.f32.partialorder %v466, 8.507059e+37
    %v468 = vand.u32 %v456, 2147483648
    %v469 = vor.u32 1.1754944e-38, %v468
    %v470 = vsel %vm467, %v469, %v465
    %v471 = vmul.f32 1.0, %v470
    %v472 = vtanh.pop %v452
    %v473 = vmul.f32 %v471, %v344
    %475 = vrot.lane.b32.xlu0 %v472, 64
    %v476 = vpop.permute.xlu0 %475
    %v478 = vmul.f32 %v471, %v476
    %480 = vrot.lane.b32.xlu0 %v478, 32
    %v481 = vpop.permute.xlu0 %480
    %v483 = vadd.f32 %v473, %v481
    %v484 = vtanh.pop %v483
    %486 = vrot.lane.b32.xlu0 %v484, 64
    %v487 = vpop.permute.xlu0 %486
    %v489 = vmul.f32 %v471, %v487
    %491 = vrot.lane.b32.xlu0 %v489, 32
    %v492 = vpop.permute.xlu0 %491
    %495 = vrot.lane.b32.xlu0 %v419, 64
    %v496 = vpop.permute.xlu0 %495
    %v498 = vsel %vm72, %v492, %v496
    %v500 = vsel %vm140, %v498, 0
    %502 = vmatpush.msra.mxu0 0.0
    %503 = vmatpush.msra.mxu0 0.0
    %504 = vmatpush.msra.mxu0 0.0
    %505 = vmatpush.msra.mxu0 0.0
    %506 = vmatpush.msra.mxu0 0.0
    %507 = vmatpush.msra.mxu0 0.0
    %508 = vmatpush.msra.mxu0 0.0
    %509 = vmatpush.msra.mxu0 0.0
    %510 = vmatpush.msra.mxu0 %v215
    %511 = vmatpush.msra.mxu0 %v214
    %512 = vmatpush.msra.mxu0 %v213
    %513 = vmatpush.msra.mxu0 %v212
    %514 = vmatpush.msra.mxu0 %v211
    %515 = vmatpush.msra.mxu0 %v210
    %516 = vmatpush.msra.mxu0 %v209
    %517 = vmatpush.msra.mxu0 %v208
    %518 = vmatmul.f32.gmra.mxu0 %v500
    %v519 = vpop.f32.mrf.mxu0
    %v520 = vadd.f32 %v219, %v519
    %521 = vdwg.mxu0
    %v522 = vxor.u32 %v520, 2147483648
    %v523 = vmul.f32 %v522, 1.442695
    %v524 = vpow.pop %v523
    %v525 = vadd.f32 %v524, 1.0
    %v526 = vrcp.pop %v525
    %v527 = vmul.f32 %v525, %v526
    %v528 = vsub.f32 1.0, %v527
    %v529 = vmul.f32 %v526, %v528
    %v530 = vadd.f32 %v526, %v529
    %vm531 = vweird.f32 %v525
    %vm532 = vweird.f32 %v526
    %vm533 = vmor %vm531, %vm532
    %v534 = vsel %vm533, %v526, %v530
    %v535 = vand.u32 2147483647, %v525
    %vm536 = vcmp.eq.f32.partialorder %v535, 8.507059e+37
    %v537 = vand.u32 %v525, 2147483648
    %v538 = vor.u32 1.1754944e-38, %v537
    %v539 = vsel %vm536, %v538, %v534
    %v540 = vmul.f32 1.0, %v539
    %v541 = vtanh.pop %v520
    %v542 = vmul.f32 %v540, %v413
    %544 = vrot.lane.b32.xlu0 %v541, 64
    %v545 = vpop.permute.xlu0 %544
    %v547 = vmul.f32 %v540, %v545
    %549 = vrot.lane.b32.xlu0 %v547, 32
    %v550 = vpop.permute.xlu0 %549
    %v552 = vadd.f32 %v542, %v550
    %v553 = vtanh.pop %v552
    %555 = vrot.lane.b32.xlu0 %v553, 64
    %v556 = vpop.permute.xlu0 %555
    %v558 = vmul.f32 %v540, %v556
    %560 = vrot.lane.b32.xlu0 %v558, 32
    %v561 = vpop.permute.xlu0 %560
    %563 = vst.msk [vmem:[%s5] sm:$0xff] %vm72, %v561
    %564 = vrot.lane.b32.xlu0 %v558, 64
    %v565 = vpop.permute.xlu0 %564
    %vm567 = vcmask 523520
    %568 = vst.msk [vmem:[%s5] sm:$0xff] %vm567, %v565
    // Predicated region
    $region34: #{set2set_pallas.1} parent=1 // pred_check
      _
    $region35: #{set2set_pallas.1} parent=1 // pred_check_branch
      %570 = sbr.rel (0) target = $region37
    $region36: #{set2set_pallas.1} parent=1 // pred_region
      _
    $region37: #{set2set_pallas.1} parent=1 // pred_fallthru
      _
    // Predicated region
    $region38: #{set2set_pallas.1} parent=1 // pred_check
      _
    $region39: #{set2set_pallas.1} parent=1 // pred_check_branch
      %572 = sbr.rel (0) target = $region41
    $region40: #{set2set_pallas.1} parent=1 // pred_region
      _
    $region41: #{set2set_pallas.1} parent=1 // pred_fallthru
      _
    %573 = vsyncpa [#allocation3], 1
    %574 = vsyncpa [#allocation5], 1

</llo_original>
